<compile_context>
chip_gen: v5e
topology: v5e:2x2
jax: 0.10.0
libtpu: 0.0.40
codegen_flags: <defaults>
</compile_context>

<pallas_src>
import jax
import jax.numpy as jnp
from jax.experimental import pallas as pl
from jax.experimental.pallas import tpu as pltpu

# Module hyper-parameters (from the PyTorch source).
BLOCK_SIZE = 128
N_EMBD = 512
HEAD_SIZE = 64
DROPOUT = 0.1  # TODO(synk): dropout is eval-mode identity (no clean equivalent
               # of torch RNG-matching train-mode dropout).


def head_kernel(x_ref, wqkv_ref, o_ref):
    # x_ref: (T, C) block for the current batch element (batch dim squeezed).
    # wqkv_ref: (C, 3H) fused projection weight [wq | wk | wv].
    H = HEAD_SIZE

    x = x_ref[...].astype(jnp.bfloat16)          # (T, C)  bf16 MXU operand
    wqkv = wqkv_ref[...].astype(jnp.bfloat16)    # (C, 3H)

    # One fused projection: (T, C) @ (C, 3H) -> (T, 3H), f32 accumulation.
    qkv = jnp.dot(x, wqkv, preferred_element_type=jnp.float32)
    q = qkv[:, 0 * H:1 * H]                      # (T, H) f32
    k = qkv[:, 1 * H:2 * H]
    v = qkv[:, 2 * H:3 * H]

    scale = jnp.float32(H) ** -0.5
    # q @ k^T without materializing a transpose: contract over H of both sides.
    wei = jax.lax.dot_general(
        q.astype(jnp.bfloat16), k.astype(jnp.bfloat16),
        dimension_numbers=(((1,), (1,)), ((), ())),
        preferred_element_type=jnp.float32) * scale          # (T, T) f32

    # Causal mask: upper triangle -> -inf (diagonal kept, so softmax is safe).
    T = wei.shape[0]
    row = jax.lax.broadcasted_iota(jnp.int32, (T, T), 0)
    col = jax.lax.broadcasted_iota(jnp.int32, (T, T), 1)
    wei = jnp.where(col <= row, wei, -jnp.inf)

    # Numerically stable softmax along the last axis, in f32 (VPU/EUP path).
    wei = wei - jnp.max(wei, axis=-1, keepdims=True)
    p = jnp.exp(wei)
    p = p * pl.reciprocal(jnp.sum(p, axis=-1, keepdims=True), approx=True)

    # Dropout (eval mode) is identity.
    o_ref[...] = jnp.dot(p.astype(jnp.bfloat16), v.astype(jnp.bfloat16),
                         preferred_element_type=jnp.float32)  # (T, H) f32


def head_forward(x, wq, wk, wv):
    """x: (B, T, C) f32; wq/wk/wv: (C, H) f32  ->  (B, T, H) f32."""
    B, T, C = x.shape
    H = wq.shape[1]
    # Fuse the three projection weights into one (C, 3H) matrix.
    wqkv = jnp.concatenate([wq, wk, wv], axis=1)

    grid_spec = pltpu.PrefetchScalarGridSpec(
        num_scalar_prefetch=0,
        grid=(B,),
        in_specs=[
            pl.BlockSpec((None, T, C), lambda b: (b, 0, 0)),   # batch squeezed
            pl.BlockSpec((C, 3 * H), lambda b: (0, 0)),
        ],
        out_specs=pl.BlockSpec((None, T, H), lambda b: (b, 0, 0)),
    )
    return pl.pallas_call(
        head_kernel,
        out_shape=jax.ShapeDtypeStruct((B, T, H), jnp.float32),
        grid_spec=grid_spec,
        compiler_params=pltpu.CompilerParams(
            dimension_semantics=("parallel",)),
    )(x, wqkv)


def reference_forward(x, wq, wk, wv):
    """Pure-JAX f32 reference mirroring the PyTorch forward (eval mode)."""
    q = x @ wq
    k = x @ wk
    v = x @ wv
    wei = (q @ jnp.swapaxes(k, -2, -1)) * (k.shape[-1] ** -0.5)
    T = x.shape[1]
    tril = jnp.tril(jnp.ones((T, T), dtype=bool))
    wei = jnp.where(tril, wei, -jnp.inf)
    wei = jax.nn.softmax(wei, axis=-1)
    return wei @ v


if __name__ == "__main__":
    key = jax.random.PRNGKey(0)
    kx, kq, kk, kv = jax.random.split(key, 4)

    B, T, C, H = 2, BLOCK_SIZE, N_EMBD, HEAD_SIZE
    x = jax.random.normal(kx, (B, T, C), dtype=jnp.float32)

    # Deterministic parameter init (nn.Linear-like uniform(-1/sqrt(C), 1/sqrt(C))),
    # stored pre-transposed as (C, H).
    bound = 1.0 / (C ** 0.5)
    wq = jax.random.uniform(kq, (C, H), jnp.float32, -bound, bound)
    wk = jax.random.uniform(kk, (C, H), jnp.float32, -bound, bound)
    wv = jax.random.uniform(kv, (C, H), jnp.float32, -bound, bound)

    out = head_forward(x, wq, wk, wv)
    out = jax.block_until_ready(out)

    ref = reference_forward(x, wq, wk, wv)
    assert out.shape == (B, T, H)
    # bf16 MXU inputs (f32 accumulation) -> loosened tolerance vs. f32 reference.
    assert jnp.allclose(out, ref, atol=2e-2, rtol=2e-2), "mismatch vs reference"

    print("KERNEL_OK")
</pallas_src>

<mosaic_0001>
module attributes {stable_mosaic.version = 11 : i64} {
  func.func @head_kernel(%arg0: i32, %arg1: memref<1x128x512xf32, #tpu.memory_space<vmem>>, %arg2: memref<512x192xf32, #tpu.memory_space<vmem>>, %arg3: memref<1x128x64xf32, #tpu.memory_space<vmem>>) attributes {dimension_semantics = [#tpu.dimension_semantics<parallel>], iteration_bounds = array<i64: 2>, scalar_prefetch = 0 : i64, scratch_operands = 0 : i64, tpu.core_type = #tpu.core_type<tc>, window_params = [{transform_indices = @transform_0, window_bounds = array<i64: 1, 128, 512>}, {pipeline_mode = #tpu.pipeline_mode<synchronous>, transform_indices = @transform_1, window_bounds = array<i64: 512, 192>}, {transform_indices = @transform_2, window_bounds = array<i64: 1, 128, 64>}]} {
    %c0 = arith.constant 0 : index
    %c0_0 = arith.constant 0 : index
    %c0_1 = arith.constant 0 : index
    %0 = vector.load %arg1[%c0, %c0_0, %c0_1] : memref<1x128x512xf32, #tpu.memory_space<vmem>>, vector<1x128x512xf32>
    %1 = vector.shape_cast %0 : vector<1x128x512xf32> to vector<128x512xf32>
    %2 = arith.truncf %1 : vector<128x512xf32> to vector<128x512xbf16>
    %c0_2 = arith.constant 0 : index
    %c0_3 = arith.constant 0 : index
    %3 = vector.load %arg2[%c0_2, %c0_3] : memref<512x192xf32, #tpu.memory_space<vmem>>, vector<512x192xf32>
    %4 = arith.truncf %3 : vector<512x192xf32> to vector<512x192xbf16>
    %cst = arith.constant dense<0.000000e+00> : vector<128x192xf32>
    %5 = tpu.matmul %2, %4, %cst {dimension_numbers = #tpu.dot_dimension_numbers<[1], [0], [0], [1], [0, 0, 1, 1], [], []>} : vector<128x512xbf16>, vector<512x192xbf16>, vector<128x192xf32> -> vector<128x192xf32>
    %6 = vector.extract_strided_slice %5 {offsets = [0, 0], sizes = [128, 64], strides = [1, 1]} : vector<128x192xf32> to vector<128x64xf32>
    %7 = vector.extract_strided_slice %5 {offsets = [0, 64], sizes = [128, 64], strides = [1, 1]} : vector<128x192xf32> to vector<128x64xf32>
    %8 = vector.extract_strided_slice %5 {offsets = [0, 128], sizes = [128, 64], strides = [1, 1]} : vector<128x192xf32> to vector<128x64xf32>
    %cst_4 = arith.constant 6.400000e+01 : f32
    %cst_5 = arith.constant -5.000000e-01 : f32
    %9 = math.powf %cst_4, %cst_5 : f32
    %10 = arith.truncf %6 : vector<128x64xf32> to vector<128x64xbf16>
    %11 = arith.truncf %7 : vector<128x64xf32> to vector<128x64xbf16>
    %cst_6 = arith.constant dense<0.000000e+00> : vector<128x128xf32>
    %12 = tpu.matmul %10, %11, %cst_6 {dimension_numbers = #tpu.dot_dimension_numbers<[1], [1], [0], [0], [0, 0, 1, 0], [], []>} : vector<128x64xbf16>, vector<128x64xbf16>, vector<128x128xf32> -> vector<128x128xf32>
    %13 = vector.broadcast %9 : f32 to vector<128x128xf32>
    %14 = arith.mulf %12, %13 : vector<128x128xf32>
    %15 = tpu.iota {dimensions = array<i32: 0>} : vector<128x128xi32>
    %16 = tpu.iota {dimensions = array<i32: 1>} : vector<128x128xi32>
    %17 = arith.cmpi sle, %16, %15 : vector<128x128xi32>
    %cst_7 = arith.constant 0xFF800000 : f32
    %18 = vector.broadcast %cst_7 : f32 to vector<128x128xf32>
    %19 = arith.select %17, %14, %18 : vector<128x128xi1>, vector<128x128xf32>
    %cst_8 = arith.constant dense<0xFF800000> : vector<128xf32>
    %20 = vector.multi_reduction <maximumf>, %19, %cst_8 [1] : vector<128x128xf32> to vector<128xf32>
    %21 = vector.shape_cast %20 : vector<128xf32> to vector<128x1xf32>
    %22 = vector.broadcast %21 : vector<128x1xf32> to vector<128x128xf32>
    %23 = arith.subf %19, %22 : vector<128x128xf32>
    %24 = math.exp %23 : vector<128x128xf32>
    %cst_9 = arith.constant dense<0.000000e+00> : vector<128xf32>
    %25 = vector.multi_reduction <add>, %24, %cst_9 [1] : vector<128x128xf32> to vector<128xf32>
    %26 = vector.shape_cast %25 : vector<128xf32> to vector<128x1xf32>
    %27 = tpu.reciprocal %26 {approx = true} : vector<128x1xf32> -> vector<128x1xf32>
    %28 = vector.broadcast %27 : vector<128x1xf32> to vector<128x128xf32>
    %29 = arith.mulf %24, %28 : vector<128x128xf32>
    %30 = arith.truncf %29 : vector<128x128xf32> to vector<128x128xbf16>
    %31 = arith.truncf %8 : vector<128x64xf32> to vector<128x64xbf16>
    %cst_10 = arith.constant dense<0.000000e+00> : vector<128x64xf32>
    %32 = tpu.matmul %30, %31, %cst_10 {dimension_numbers = #tpu.dot_dimension_numbers<[1], [0], [0], [1], [0, 0, 1, 1], [], []>} : vector<128x128xbf16>, vector<128x64xbf16>, vector<128x64xf32> -> vector<128x64xf32>
    %c0_11 = arith.constant 0 : index
    %c0_12 = arith.constant 0 : index
    %c0_13 = arith.constant 0 : index
    %33 = vector.load %arg3[%c0_11, %c0_12, %c0_13] : memref<1x128x64xf32, #tpu.memory_space<vmem>>, vector<1x128x64xf32>
    %34 = vector.shape_cast %33 : vector<1x128x64xf32> to vector<128x64xf32>
    %35 = vector.shape_cast %32 : vector<128x64xf32> to vector<1x128x64xf32>
    tpu.vector_store %arg3[%c0_11, %c0_12, %c0_13], %35 {strides = array<i32>} : memref<1x128x64xf32, #tpu.memory_space<vmem>>, vector<1x128x64xf32>,
    return
  }
  func.func @transform_0(%arg0: i32) -> (i32, i32, i32) {
    %c0_i32 = arith.constant 0 : i32
    %c0_i32_0 = arith.constant 0 : i32
    %c0_i32_1 = arith.constant 0 : i32
    return %arg0, %c0_i32, %c0_i32_0 : i32, i32, i32
  }
  func.func @transform_1(%arg0: i32) -> (i32, i32) {
    %c0_i32 = arith.constant 0 : i32
    %c0_i32_0 = arith.constant 0 : i32
    %c0_i32_1 = arith.constant 0 : i32
    return %c0_i32, %c0_i32_0 : i32, i32
  }
  func.func @transform_2(%arg0: i32) -> (i32, i32, i32) {
    %c0_i32 = arith.constant 0 : i32
    %c0_i32_0 = arith.constant 0 : i32
    %c0_i32_1 = arith.constant 0 : i32
    return %arg0, %c0_i32, %c0_i32_0 : i32, i32, i32
  }
}

</mosaic_0001>

<llo_original>
// kernel: tpu_custom_call.1
$region0: #{tpu_custom_call.1}
  #allocation0 [shape = 'u32[]', space=smem, size = 0x4, offset = 0x4, fixed_abs, tag = 'smem constant byte address 0x4 - core index']
  #allocation1 [shape = 'u32[72,128]{1,0:T(1,128)}', space=vmem, size = 0x9000, scoped, tag = 'internal scratch']
  %s0 = inlined_call_operand.vmem [shape: f32[2,128,512], index: 0, kind: input, shape index: {}]
  %s1 = inlined_call_operand.vmem [shape: f32[512,192], index: 1, kind: input, shape index: {}]
  %s2 = inlined_call_operand.vmem [shape: f32[2,128,64], index: 2, kind: output, shape index: {}]
  %s3 = sld [smem:[#allocation0]]
  $region41: #{tpu_custom_call.1} parent=0
    _
  %s5 = ssub.s32 1, %s3
  %s6 = scalar_select 0, %s5, %s3
  loop: start=0, step=1, limit=4
  $region2: #{tpu_custom_call.1} parent=0 // loop_pre_header
    _
  $region3: #{tpu_custom_call.1} parent=0 // loop_header
    %s8 = sphi 0, %s12
    %p9 = scmp.ge.s32.totalorder %s8, 4
    %s18 = sphi 0, %s20
    %s21 = sphi 0, %s18
    %s22 = sphi 0, %s21
    %s38 = sphi 0, %s22
    %s42 = sphi 0, %s42
    %s44 = sphi 0, %s42
    %s45 = sphi 0, %s44
    %s59 = sphi 0, %s45
    %s65 = sphi 0, %s67
    %s68 = sphi 0, %s65
    %s69 = sphi 0, %s68
    %s85 = sphi 0, %s69
  $region4: #{tpu_custom_call.1} parent=0 // loop_header_branch
    %11 = sbr.rel (%p9) target = $region8
  $region5: #{tpu_custom_call.1} parent=0 // loop_body
    %s13 = ssub.s32 %s8, 1
    %s14 = ssub.s32 %s8, 2
    %s15 = sadd.s32 %s8, 1
    %s16 = ssub.s32 %s8, %s15
    %p17 = scmp.eq.s32.totalorder %s16, 0
    %s19 = sadd.s32 %s18, 1
    %s20 = scalar_select %p17, %s18, %s19
    %p23 = pneg %p17
    %p24 = scmp.eq.s32.totalorder %s8, 1
    %p25 = por %p23, %p24
    %p26 = scmp.ne.s32.totalorder %s18, %s21
    %p27 = scmp.eq.s32.totalorder %s8, 0
    %p28 = por %p26, %p27
    %p29 = scmp.ne.s32.totalorder %s18, %s21
    %p30 = scmp.eq.s32.totalorder %s13, 1
    %p31 = por %p29, %p30
    %p32 = scmp.ne.s32.totalorder %s21, %s22
    %p33 = scmp.eq.s32.totalorder %s13, 0
    %p34 = por %p32, %p33
    %p35 = scmp.ne.s32.totalorder %s21, %s22
    %p36 = scmp.eq.s32.totalorder %s14, 1
    %p37 = por %p35, %p36
    %p39 = scmp.ne.s32.totalorder %s22, %s38
    %p40 = scmp.eq.s32.totalorder %s14, 0
    %p41 = por %p39, %p40
    %s43 = sadd.s32 %s42, 1
    %p46 = scmp.eq.s32.totalorder %s8, 1
    %p47 = scmp.ne.s32.totalorder %s42, %s44
    %p48 = scmp.eq.s32.totalorder %s8, 0
    %p49 = por %p47, %p48
    %p50 = scmp.ne.s32.totalorder %s42, %s44
    %p51 = scmp.eq.s32.totalorder %s13, 1
    %p52 = por %p50, %p51
    %p53 = scmp.ne.s32.totalorder %s44, %s45
    %p54 = scmp.eq.s32.totalorder %s13, 0
    %p55 = por %p53, %p54
    %p56 = scmp.ne.s32.totalorder %s44, %s45
    %p57 = scmp.eq.s32.totalorder %s14, 1
    %p58 = por %p56, %p57
    %p60 = scmp.ne.s32.totalorder %s45, %s59
    %p61 = scmp.eq.s32.totalorder %s14, 0
    %p62 = por %p60, %p61
    %s63 = ssub.s32 %s8, %s15
    %p64 = scmp.eq.s32.totalorder %s63, 0
    %s66 = sadd.s32 %s65, 1
    %s67 = scalar_select %p64, %s65, %s66
    %p70 = pneg %p64
    %p71 = scmp.eq.s32.totalorder %s8, 1
    %p72 = por %p70, %p71
    %p73 = scmp.ne.s32.totalorder %s65, %s68
    %p74 = scmp.eq.s32.totalorder %s8, 0
    %p75 = por %p73, %p74
    %p76 = scmp.ne.s32.totalorder %s65, %s68
    %p77 = scmp.eq.s32.totalorder %s13, 1
    %p78 = por %p76, %p77
    %p79 = scmp.ne.s32.totalorder %s68, %s69
    %p80 = scmp.eq.s32.totalorder %s13, 0
    %p81 = por %p79, %p80
    %p82 = scmp.ne.s32.totalorder %s68, %s69
    %p83 = scmp.eq.s32.totalorder %s14, 1
    %p84 = por %p82, %p83
    %p86 = scmp.ne.s32.totalorder %s69, %s85
    %p87 = scmp.eq.s32.totalorder %s14, 0
    %p88 = por %p86, %p87
    %p89 = scmp.le.s32.totalorder 1, %s8
    %p90 = scmp.lt.s32.totalorder %s8, 3
    %p91 = pnand %p89, %p90
    %p92 = pneg %p91
    // Predicated region
    $region9: #{tpu_custom_call.1} parent=5 // pred_check
      _
    $region10: #{tpu_custom_call.1} parent=5 // pred_check_branch
      %94 = sbr.rel (%p91) target = $region12
    $region11: #{tpu_custom_call.1} parent=5 // pred_region
      %s95 = ssub.s32 %s8, 1
      // Predicated region
      $region13: #{tpu_custom_call.1} parent=11 // pred_check
        %p96 = pneg %p55
      $region14: #{tpu_custom_call.1} parent=11 // pred_check_branch
        %98 = sbr.rel (%p96) target = $region16
      $region15: #{tpu_custom_call.1} parent=11 // pred_region
        _
      $region16: #{tpu_custom_call.1} parent=11 // pred_fallthru
        _
    $region12: #{tpu_custom_call.1} parent=5 // pred_fallthru
      _
    %p99 = scmp.lt.s32.totalorder %s8, 2
    // Predicated region
    $region17: #{tpu_custom_call.1} parent=5 // pred_check
      %p100 = pneg %p99
    $region18: #{tpu_custom_call.1} parent=5 // pred_check_branch
      %102 = sbr.rel (%p100) target = $region20
    $region19: #{tpu_custom_call.1} parent=5 // pred_region
      // Predicated region
      $region21: #{tpu_custom_call.1} parent=19 // pred_check
        %p103 = pneg %p28
      $region22: #{tpu_custom_call.1} parent=19 // pred_check_branch
        %105 = sbr.rel (%p103) target = $region24
      $region23: #{tpu_custom_call.1} parent=19 // pred_region
        %p106 = scmp.lt.s32.totalorder %s8, 1
        %s107 = scalar_select %p106, %s8, 1
        %s108 = smul.addr %s107, 64
        %s109 = smul.addr %s108, 8
        %s110 = scalar_lea.vmem %s0, %s109
      $region24: #{tpu_custom_call.1} parent=19 // pred_fallthru
        _
    $region20: #{tpu_custom_call.1} parent=5 // pred_fallthru
      _
    %p111 = scmp.le.s32.totalorder 1, %s8
    %p112 = scmp.lt.s32.totalorder %s8, 3
    %p113 = pnand %p111, %p112
    %p114 = pneg %p113
    // Predicated region
    $region25: #{tpu_custom_call.1} parent=5 // pred_check
      _
    $region26: #{tpu_custom_call.1} parent=5 // pred_check_branch
      %116 = sbr.rel (%p113) target = $region28
    $region27: #{tpu_custom_call.1} parent=5 // pred_region
      %s117 = ssub.s32 %s8, 1
      %p118 = scmp.lt.s32.totalorder %s13, 1
      %s119 = scalar_select %p118, %s13, 1
      %s120 = smul.addr %s119, 64
      %s121 = smul.addr %s120, 8
      %s122 = scalar_lea.vmem %s0, %s121
      %p123 = pneg %p34
      %p124 = pneg %p31
      %p125 = pneg %p55
      %p126 = pneg %p52
      %p127 = pneg %p81
      %p128 = pneg %p78
      %p129 = scmp.lt.s32.totalorder %s13, 1
      %s130 = scalar_select %p129, %s13, 1
      %s131 = smul.addr %s130, 16
      %s132 = smul.addr %s131, 8
      %s133 = scalar_lea.vmem %s2, %s132
      %p134 = scmp.lt.s32.totalorder %s13, 1
      %s135 = scalar_select %p134, %s13, 1
      %s136 = smul.addr %s135, 64
      %s137 = smul.addr %s136, 8
      %s138 = scalar_lea.vmem %s0, %s137
      %p139 = scmp.lt.s32.totalorder %s13, 1
      %s140 = scalar_select %p139, %s13, 1
      %s141 = smul.addr %s140, 16
      %s142 = smul.addr %s141, 8
      %s143 = scalar_lea.vmem %s2, %s142
      %v144 = vld [vmem:[%s138] sm:$0xff]
      %v145 = vld [vmem:[%s138 + $0x8] sm:$0xff]
      %v146 = vld [vmem:[%s138 + $0x10] sm:$0xff]
      %v147 = vld [vmem:[%s138 + $0x18] sm:$0xff]
      %v148 = vld [vmem:[%s138 + $0x20] sm:$0xff]
      %v149 = vld [vmem:[%s138 + $0x28] sm:$0xff]
      %v150 = vld [vmem:[%s138 + $0x30] sm:$0xff]
      %v151 = vld [vmem:[%s138 + $0x38] sm:$0xff]
      %v152 = vld [vmem:[%s138 + $0x40] sm:$0xff]
      %v153 = vld [vmem:[%s138 + $0x48] sm:$0xff]
      %v154 = vld [vmem:[%s138 + $0x50] sm:$0xff]
      %v155 = vld [vmem:[%s138 + $0x58] sm:$0xff]
      %v156 = vld [vmem:[%s138 + $0x60] sm:$0xff]
      %v157 = vld [vmem:[%s138 + $0x68] sm:$0xff]
      %v158 = vld [vmem:[%s138 + $0x70] sm:$0xff]
      %v159 = vld [vmem:[%s138 + $0x78] sm:$0xff]
      %v160 = vld [vmem:[%s138 + $0x80] sm:$0xff]
      %v161 = vld [vmem:[%s138 + $0x88] sm:$0xff]
      %v162 = vld [vmem:[%s138 + $0x90] sm:$0xff]
      %v163 = vld [vmem:[%s138 + $0x98] sm:$0xff]
      %v164 = vld [vmem:[%s138 + $0xa0] sm:$0xff]
      %v165 = vld [vmem:[%s138 + $0xa8] sm:$0xff]
      %v166 = vld [vmem:[%s138 + $0xb0] sm:$0xff]
      %v167 = vld [vmem:[%s138 + $0xb8] sm:$0xff]
      %v168 = vld [vmem:[%s138 + $0xc0] sm:$0xff]
      %v169 = vld [vmem:[%s138 + $0xc8] sm:$0xff]
      %v170 = vld [vmem:[%s138 + $0xd0] sm:$0xff]
      %v171 = vld [vmem:[%s138 + $0xd8] sm:$0xff]
      %v172 = vld [vmem:[%s138 + $0xe0] sm:$0xff]
      %v173 = vld [vmem:[%s138 + $0xe8] sm:$0xff]
      %v174 = vld [vmem:[%s138 + $0xf0] sm:$0xff]
      %v175 = vld [vmem:[%s138 + $0xf8] sm:$0xff]
      %v176 = vld [vmem:[%s138 + $0x100] sm:$0xff]
      %v177 = vld [vmem:[%s138 + $0x108] sm:$0xff]
      %v178 = vld [vmem:[%s138 + $0x110] sm:$0xff]
      %v179 = vld [vmem:[%s138 + $0x118] sm:$0xff]
      %v180 = vld [vmem:[%s138 + $0x120] sm:$0xff]
      %v181 = vld [vmem:[%s138 + $0x128] sm:$0xff]
      %v182 = vld [vmem:[%s138 + $0x130] sm:$0xff]
      %v183 = vld [vmem:[%s138 + $0x138] sm:$0xff]
      %v184 = vld [vmem:[%s138 + $0x140] sm:$0xff]
      %v185 = vld [vmem:[%s138 + $0x148] sm:$0xff]
      %v186 = vld [vmem:[%s138 + $0x150] sm:$0xff]
      %v187 = vld [vmem:[%s138 + $0x158] sm:$0xff]
      %v188 = vld [vmem:[%s138 + $0x160] sm:$0xff]
      %v189 = vld [vmem:[%s138 + $0x168] sm:$0xff]
      %v190 = vld [vmem:[%s138 + $0x170] sm:$0xff]
      %v191 = vld [vmem:[%s138 + $0x178] sm:$0xff]
      %v192 = vld [vmem:[%s138 + $0x180] sm:$0xff]
      %v193 = vld [vmem:[%s138 + $0x188] sm:$0xff]
      %v194 = vld [vmem:[%s138 + $0x190] sm:$0xff]
      %v195 = vld [vmem:[%s138 + $0x198] sm:$0xff]
      %v196 = vld [vmem:[%s138 + $0x1a0] sm:$0xff]
      %v197 = vld [vmem:[%s138 + $0x1a8] sm:$0xff]
      %v198 = vld [vmem:[%s138 + $0x1b0] sm:$0xff]
      %v199 = vld [vmem:[%s138 + $0x1b8] sm:$0xff]
      %v200 = vld [vmem:[%s138 + $0x1c0] sm:$0xff]
      %v201 = vld [vmem:[%s138 + $0x1c8] sm:$0xff]
      %v202 = vld [vmem:[%s138 + $0x1d0] sm:$0xff]
      %v203 = vld [vmem:[%s138 + $0x1d8] sm:$0xff]
      %v204 = vld [vmem:[%s138 + $0x1e0] sm:$0xff]
      %v205 = vld [vmem:[%s138 + $0x1e8] sm:$0xff]
      %v206 = vld [vmem:[%s138 + $0x1f0] sm:$0xff]
      %v207 = vld [vmem:[%s138 + $0x1f8] sm:$0xff]
      %v208 = vpack.c.bf16 %v148, %v144
      %v209 = vpack.c.bf16 %v149, %v145
      %v210 = vpack.c.bf16 %v150, %v146
      %v211 = vpack.c.bf16 %v151, %v147
      %v212 = vpack.c.bf16 %v156, %v152
      %v213 = vpack.c.bf16 %v157, %v153
      %v214 = vpack.c.bf16 %v158, %v154
      %v215 = vpack.c.bf16 %v159, %v155
      %v216 = vpack.c.bf16 %v164, %v160
      %v217 = vpack.c.bf16 %v165, %v161
      %v218 = vpack.c.bf16 %v166, %v162
      %v219 = vpack.c.bf16 %v167, %v163
      %v220 = vpack.c.bf16 %v172, %v168
      %v221 = vpack.c.bf16 %v173, %v169
      %v222 = vpack.c.bf16 %v174, %v170
      %v223 = vpack.c.bf16 %v175, %v171
      %v224 = vpack.c.bf16 %v180, %v176
      %v225 = vpack.c.bf16 %v181, %v177
      %v226 = vpack.c.bf16 %v182, %v178
      %v227 = vpack.c.bf16 %v183, %v179
      %v228 = vpack.c.bf16 %v188, %v184
      %v229 = vpack.c.bf16 %v189, %v185
      %v230 = vpack.c.bf16 %v190, %v186
      %v231 = vpack.c.bf16 %v191, %v187
      %v232 = vpack.c.bf16 %v196, %v192
      %v233 = vpack.c.bf16 %v197, %v193
      %v234 = vpack.c.bf16 %v198, %v194
      %v235 = vpack.c.bf16 %v199, %v195
      %v236 = vpack.c.bf16 %v204, %v200
      %v237 = vpack.c.bf16 %v205, %v201
      %v238 = vpack.c.bf16 %v206, %v202
      %v239 = vpack.c.bf16 %v207, %v203
      %v240 = vld [vmem:[%s1] sm:$0xff]
      %v241 = vld [vmem:[%s1 + $0x8] sm:$0xff]
      %v242 = vld [vmem:[%s1 + $0x10] sm:$0xff]
      %v243 = vld [vmem:[%s1 + $0x18] sm:$0xff]
      %v244 = vld [vmem:[%s1 + $0x20] sm:$0xff]
      %v245 = vld [vmem:[%s1 + $0x28] sm:$0xff]
      %v246 = vld [vmem:[%s1 + $0x30] sm:$0xff]
      %v247 = vld [vmem:[%s1 + $0x38] sm:$0xff]
      %v248 = vld [vmem:[%s1 + $0x40] sm:$0xff]
      %v249 = vld [vmem:[%s1 + $0x48] sm:$0xff]
      %v250 = vld [vmem:[%s1 + $0x50] sm:$0xff]
      %v251 = vld [vmem:[%s1 + $0x58] sm:$0xff]
      %v252 = vld [vmem:[%s1 + $0x60] sm:$0xff]
      %v253 = vld [vmem:[%s1 + $0x68] sm:$0xff]
      %v254 = vld [vmem:[%s1 + $0x70] sm:$0xff]
      %v255 = vld [vmem:[%s1 + $0x78] sm:$0xff]
      %v256 = vld [vmem:[%s1 + $0x80] sm:$0xff]
      %v257 = vld [vmem:[%s1 + $0x88] sm:$0xff]
      %v258 = vld [vmem:[%s1 + $0x90] sm:$0xff]
      %v259 = vld [vmem:[%s1 + $0x98] sm:$0xff]
      %v260 = vld [vmem:[%s1 + $0xa0] sm:$0xff]
      %v261 = vld [vmem:[%s1 + $0xa8] sm:$0xff]
      %v262 = vld [vmem:[%s1 + $0xb0] sm:$0xff]
      %v263 = vld [vmem:[%s1 + $0xb8] sm:$0xff]
      %v264 = vld [vmem:[%s1 + $0xc0] sm:$0xff]
      %v265 = vld [vmem:[%s1 + $0xc8] sm:$0xff]
      %v266 = vld [vmem:[%s1 + $0xd0] sm:$0xff]
      %v267 = vld [vmem:[%s1 + $0xd8] sm:$0xff]
      %v268 = vld [vmem:[%s1 + $0xe0] sm:$0xff]
      %v269 = vld [vmem:[%s1 + $0xe8] sm:$0xff]
      %v270 = vld [vmem:[%s1 + $0xf0] sm:$0xff]
      %v271 = vld [vmem:[%s1 + $0xf8] sm:$0xff]
      %v272 = vld [vmem:[%s1 + $0x100] sm:$0xff]
      %v273 = vld [vmem:[%s1 + $0x108] sm:$0xff]
      %v274 = vld [vmem:[%s1 + $0x110] sm:$0xff]
      %v275 = vld [vmem:[%s1 + $0x118] sm:$0xff]
      %v276 = vld [vmem:[%s1 + $0x120] sm:$0xff]
      %v277 = vld [vmem:[%s1 + $0x128] sm:$0xff]
      %v278 = vld [vmem:[%s1 + $0x130] sm:$0xff]
      %v279 = vld [vmem:[%s1 + $0x138] sm:$0xff]
      %v280 = vld [vmem:[%s1 + $0x140] sm:$0xff]
      %v281 = vld [vmem:[%s1 + $0x148] sm:$0xff]
      %v282 = vld [vmem:[%s1 + $0x150] sm:$0xff]
      %v283 = vld [vmem:[%s1 + $0x158] sm:$0xff]
      %v284 = vld [vmem:[%s1 + $0x160] sm:$0xff]
      %v285 = vld [vmem:[%s1 + $0x168] sm:$0xff]
      %v286 = vld [vmem:[%s1 + $0x170] sm:$0xff]
      %v287 = vld [vmem:[%s1 + $0x178] sm:$0xff]
      %v288 = vld [vmem:[%s1 + $0x180] sm:$0xff]
      %v289 = vld [vmem:[%s1 + $0x188] sm:$0xff]
      %v290 = vld [vmem:[%s1 + $0x190] sm:$0xff]
      %v291 = vld [vmem:[%s1 + $0x198] sm:$0xff]
      %v292 = vld [vmem:[%s1 + $0x1a0] sm:$0xff]
      %v293 = vld [vmem:[%s1 + $0x1a8] sm:$0xff]
      %v294 = vld [vmem:[%s1 + $0x1b0] sm:$0xff]
      %v295 = vld [vmem:[%s1 + $0x1b8] sm:$0xff]
      %v296 = vld [vmem:[%s1 + $0x1c0] sm:$0xff]
      %v297 = vld [vmem:[%s1 + $0x1c8] sm:$0xff]
      %v298 = vld [vmem:[%s1 + $0x1d0] sm:$0xff]
      %v299 = vld [vmem:[%s1 + $0x1d8] sm:$0xff]
      %v300 = vld [vmem:[%s1 + $0x1e0] sm:$0xff]
      %v301 = vld [vmem:[%s1 + $0x1e8] sm:$0xff]
      %v302 = vld [vmem:[%s1 + $0x1f0] sm:$0xff]
      %v303 = vld [vmem:[%s1 + $0x1f8] sm:$0xff]
      %v304 = vld [vmem:[%s1 + $0x200] sm:$0xff]
      %v305 = vld [vmem:[%s1 + $0x208] sm:$0xff]
      %v306 = vld [vmem:[%s1 + $0x210] sm:$0xff]
      %v307 = vld [vmem:[%s1 + $0x218] sm:$0xff]
      %v308 = vld [vmem:[%s1 + $0x220] sm:$0xff]
      %v309 = vld [vmem:[%s1 + $0x228] sm:$0xff]
      %v310 = vld [vmem:[%s1 + $0x230] sm:$0xff]
      %v311 = vld [vmem:[%s1 + $0x238] sm:$0xff]
      %v312 = vld [vmem:[%s1 + $0x240] sm:$0xff]
      %v313 = vld [vmem:[%s1 + $0x248] sm:$0xff]
      %v314 = vld [vmem:[%s1 + $0x250] sm:$0xff]
      %v315 = vld [vmem:[%s1 + $0x258] sm:$0xff]
      %v316 = vld [vmem:[%s1 + $0x260] sm:$0xff]
      %v317 = vld [vmem:[%s1 + $0x268] sm:$0xff]
      %v318 = vld [vmem:[%s1 + $0x270] sm:$0xff]
      %v319 = vld [vmem:[%s1 + $0x278] sm:$0xff]
      %v320 = vld [vmem:[%s1 + $0x280] sm:$0xff]
      %v321 = vld [vmem:[%s1 + $0x288] sm:$0xff]
      %v322 = vld [vmem:[%s1 + $0x290] sm:$0xff]
      %v323 = vld [vmem:[%s1 + $0x298] sm:$0xff]
      %v324 = vld [vmem:[%s1 + $0x2a0] sm:$0xff]
      %v325 = vld [vmem:[%s1 + $0x2a8] sm:$0xff]
      %v326 = vld [vmem:[%s1 + $0x2b0] sm:$0xff]
      %v327 = vld [vmem:[%s1 + $0x2b8] sm:$0xff]
      %v328 = vld [vmem:[%s1 + $0x2c0] sm:$0xff]
      %v329 = vld [vmem:[%s1 + $0x2c8] sm:$0xff]
      %v330 = vld [vmem:[%s1 + $0x2d0] sm:$0xff]
      %v331 = vld [vmem:[%s1 + $0x2d8] sm:$0xff]
      %v332 = vld [vmem:[%s1 + $0x2e0] sm:$0xff]
      %v333 = vld [vmem:[%s1 + $0x2e8] sm:$0xff]
      %v334 = vld [vmem:[%s1 + $0x2f0] sm:$0xff]
      %v335 = vld [vmem:[%s1 + $0x2f8] sm:$0xff]
      %v336 = vld [vmem:[%s1 + $0x300] sm:$0xff]
      %v337 = vld [vmem:[%s1 + $0x308] sm:$0xff]
      %v338 = vld [vmem:[%s1 + $0x310] sm:$0xff]
      %v339 = vld [vmem:[%s1 + $0x318] sm:$0xff]
      %v340 = vld [vmem:[%s1 + $0x320] sm:$0xff]
      %v341 = vld [vmem:[%s1 + $0x328] sm:$0xff]
      %v342 = vld [vmem:[%s1 + $0x330] sm:$0xff]
      %v343 = vld [vmem:[%s1 + $0x338] sm:$0xff]
      %v344 = vld [vmem:[%s1 + $0x340] sm:$0xff]
      %v345 = vld [vmem:[%s1 + $0x348] sm:$0xff]
      %v346 = vld [vmem:[%s1 + $0x350] sm:$0xff]
      %v347 = vld [vmem:[%s1 + $0x358] sm:$0xff]
      %v348 = vld [vmem:[%s1 + $0x360] sm:$0xff]
      %v349 = vld [vmem:[%s1 + $0x368] sm:$0xff]
      %v350 = vld [vmem:[%s1 + $0x370] sm:$0xff]
      %v351 = vld [vmem:[%s1 + $0x378] sm:$0xff]
      %v352 = vld [vmem:[%s1 + $0x380] sm:$0xff]
      %v353 = vld [vmem:[%s1 + $0x388] sm:$0xff]
      %v354 = vld [vmem:[%s1 + $0x390] sm:$0xff]
      %v355 = vld [vmem:[%s1 + $0x398] sm:$0xff]
      %v356 = vld [vmem:[%s1 + $0x3a0] sm:$0xff]
      %v357 = vld [vmem:[%s1 + $0x3a8] sm:$0xff]
      %v358 = vld [vmem:[%s1 + $0x3b0] sm:$0xff]
      %v359 = vld [vmem:[%s1 + $0x3b8] sm:$0xff]
      %v360 = vld [vmem:[%s1 + $0x3c0] sm:$0xff]
      %v361 = vld [vmem:[%s1 + $0x3c8] sm:$0xff]
      %v362 = vld [vmem:[%s1 + $0x3d0] sm:$0xff]
      %v363 = vld [vmem:[%s1 + $0x3d8] sm:$0xff]
      %v364 = vld [vmem:[%s1 + $0x3e0] sm:$0xff]
      %v365 = vld [vmem:[%s1 + $0x3e8] sm:$0xff]
      %v366 = vld [vmem:[%s1 + $0x3f0] sm:$0xff]
      %v367 = vld [vmem:[%s1 + $0x3f8] sm:$0xff]
      %v368 = vpack.c.bf16 %v242, %v240
      %v369 = vpack.c.bf16 %v243, %v241
      %v370 = vpack.c.bf16 %v246, %v244
      %v371 = vpack.c.bf16 %v247, %v245
      %v372 = vpack.c.bf16 %v250, %v248
      %v373 = vpack.c.bf16 %v251, %v249
      %v374 = vpack.c.bf16 %v254, %v252
      %v375 = vpack.c.bf16 %v255, %v253
      %v376 = vpack.c.bf16 %v258, %v256
      %v377 = vpack.c.bf16 %v259, %v257
      %v378 = vpack.c.bf16 %v262, %v260
      %v379 = vpack.c.bf16 %v263, %v261
      %v380 = vpack.c.bf16 %v266, %v264
      %v381 = vpack.c.bf16 %v267, %v265
      %v382 = vpack.c.bf16 %v270, %v268
      %v383 = vpack.c.bf16 %v271, %v269
      %v384 = vpack.c.bf16 %v274, %v272
      %v385 = vpack.c.bf16 %v275, %v273
      %v386 = vpack.c.bf16 %v278, %v276
      %v387 = vpack.c.bf16 %v279, %v277
      %v388 = vpack.c.bf16 %v282, %v280
      %v389 = vpack.c.bf16 %v283, %v281
      %v390 = vpack.c.bf16 %v286, %v284
      %v391 = vpack.c.bf16 %v287, %v285
      %v392 = vpack.c.bf16 %v290, %v288
      %v393 = vpack.c.bf16 %v291, %v289
      %v394 = vpack.c.bf16 %v294, %v292
      %v395 = vpack.c.bf16 %v295, %v293
      %v396 = vpack.c.bf16 %v298, %v296
      %v397 = vpack.c.bf16 %v299, %v297
      %v398 = vpack.c.bf16 %v302, %v300
      %v399 = vpack.c.bf16 %v303, %v301
      %v400 = vpack.c.bf16 %v306, %v304
      %v401 = vpack.c.bf16 %v307, %v305
      %v402 = vpack.c.bf16 %v310, %v308
      %v403 = vpack.c.bf16 %v311, %v309
      %v404 = vpack.c.bf16 %v314, %v312
      %v405 = vpack.c.bf16 %v315, %v313
      %v406 = vpack.c.bf16 %v318, %v316
      %v407 = vpack.c.bf16 %v319, %v317
      %v408 = vpack.c.bf16 %v322, %v320
      %v409 = vpack.c.bf16 %v323, %v321
      %v410 = vpack.c.bf16 %v326, %v324
      %v411 = vpack.c.bf16 %v327, %v325
      %v412 = vpack.c.bf16 %v330, %v328
      %v413 = vpack.c.bf16 %v331, %v329
      %v414 = vpack.c.bf16 %v334, %v332
      %v415 = vpack.c.bf16 %v335, %v333
      %v416 = vpack.c.bf16 %v338, %v336
      %v417 = vpack.c.bf16 %v339, %v337
      %v418 = vpack.c.bf16 %v342, %v340
      %v419 = vpack.c.bf16 %v343, %v341
      %v420 = vpack.c.bf16 %v346, %v344
      %v421 = vpack.c.bf16 %v347, %v345
      %v422 = vpack.c.bf16 %v350, %v348
      %v423 = vpack.c.bf16 %v351, %v349
      %v424 = vpack.c.bf16 %v354, %v352
      %v425 = vpack.c.bf16 %v355, %v353
      %v426 = vpack.c.bf16 %v358, %v356
      %v427 = vpack.c.bf16 %v359, %v357
      %v428 = vpack.c.bf16 %v362, %v360
      %v429 = vpack.c.bf16 %v363, %v361
      %v430 = vpack.c.bf16 %v366, %v364
      %v431 = vpack.c.bf16 %v367, %v365
      %432 = vmatpush.bf16.msra.mxu0 %v382
      %433 = vmatpush.bf16.msra.mxu0 %v380
      %434 = vmatpush.bf16.msra.mxu0 %v378
      %435 = vmatpush.bf16.msra.mxu0 %v376
      %436 = vmatpush.bf16.msra.mxu0 %v374
      %437 = vmatpush.bf16.msra.mxu0 %v372
      %438 = vmatpush.bf16.msra.mxu0 %v370
      %439 = vmatpush.bf16.msra.mxu0 %v368
      %440 = vmatmul.bf16.gmra.mxu0 %v208
      %v441 = vpop.f32.mrf.mxu0
      %v442 = vadd.f32 0.0, %v441
      %v443 = vpop.f32.mrf.mxu0
      %v444 = vadd.f32 0.0, %v443
      %445 = vmatmul.bf16.gmra.mxu0 %v212
      %v446 = vpop.f32.mrf.mxu0
      %v447 = vadd.f32 0.0, %v446
      %v448 = vpop.f32.mrf.mxu0
      %v449 = vadd.f32 0.0, %v448
      %450 = vmatmul.bf16.gmra.mxu0 %v216
      %v451 = vpop.f32.mrf.mxu0
      %v452 = vadd.f32 0.0, %v451
      %v453 = vpop.f32.mrf.mxu0
      %v454 = vadd.f32 0.0, %v453
      %455 = vmatmul.bf16.gmra.mxu0 %v220
      %v456 = vpop.f32.mrf.mxu0
      %v457 = vadd.f32 0.0, %v456
      %v458 = vpop.f32.mrf.mxu0
      %v459 = vadd.f32 0.0, %v458
      %460 = vmatmul.bf16.gmra.mxu0 %v224
      %v461 = vpop.f32.mrf.mxu0
      %v462 = vadd.f32 0.0, %v461
      %v463 = vpop.f32.mrf.mxu0
      %v464 = vadd.f32 0.0, %v463
      %465 = vmatmul.bf16.gmra.mxu0 %v228
      %v466 = vpop.f32.mrf.mxu0
      %v467 = vadd.f32 0.0, %v466
      %v468 = vpop.f32.mrf.mxu0
      %v469 = vadd.f32 0.0, %v468
      %470 = vmatmul.bf16.gmra.mxu0 %v232
      %v471 = vpop.f32.mrf.mxu0
      %v472 = vadd.f32 0.0, %v471
      %v473 = vpop.f32.mrf.mxu0
      %v474 = vadd.f32 0.0, %v473
      %475 = vmatmul.bf16.gmra.mxu0 %v236
      %v476 = vpop.f32.mrf.mxu0
      %v477 = vadd.f32 0.0, %v476
      %v478 = vpop.f32.mrf.mxu0
      %v479 = vadd.f32 0.0, %v478
      %480 = vdwg.mxu0
      %481 = vmatpush.bf16.msra.mxu0 %v398
      %482 = vmatpush.bf16.msra.mxu0 %v396
      %483 = vmatpush.bf16.msra.mxu0 %v394
      %484 = vmatpush.bf16.msra.mxu0 %v392
      %485 = vmatpush.bf16.msra.mxu0 %v390
      %486 = vmatpush.bf16.msra.mxu0 %v388
      %487 = vmatpush.bf16.msra.mxu0 %v386
      %488 = vmatpush.bf16.msra.mxu0 %v384
      %489 = vmatmul.bf16.gmra.mxu0 %v209
      %v490 = vpop.f32.mrf.mxu0
      %v491 = vadd.f32 %v442, %v490
      %v492 = vpop.f32.mrf.mxu0
      %v493 = vadd.f32 %v444, %v492
      %494 = vmatmul.bf16.gmra.mxu0 %v213
      %v495 = vpop.f32.mrf.mxu0
      %v496 = vadd.f32 %v447, %v495
      %v497 = vpop.f32.mrf.mxu0
      %v498 = vadd.f32 %v449, %v497
      %499 = vmatmul.bf16.gmra.mxu0 %v217
      %v500 = vpop.f32.mrf.mxu0
      %v501 = vadd.f32 %v452, %v500
      %v502 = vpop.f32.mrf.mxu0
      %v503 = vadd.f32 %v454, %v502
      %504 = vmatmul.bf16.gmra.mxu0 %v221
      %v505 = vpop.f32.mrf.mxu0
      %v506 = vadd.f32 %v457, %v505
      %v507 = vpop.f32.mrf.mxu0
      %v508 = vadd.f32 %v459, %v507
      %509 = vmatmul.bf16.gmra.mxu0 %v225
      %v510 = vpop.f32.mrf.mxu0
      %v511 = vadd.f32 %v462, %v510
      %v512 = vpop.f32.mrf.mxu0
      %v513 = vadd.f32 %v464, %v512
      %514 = vmatmul.bf16.gmra.mxu0 %v229
      %v515 = vpop.f32.mrf.mxu0
      %v516 = vadd.f32 %v467, %v515
      %v517 = vpop.f32.mrf.mxu0
      %v518 = vadd.f32 %v469, %v517
      %519 = vmatmul.bf16.gmra.mxu0 %v233
      %v520 = vpop.f32.mrf.mxu0
      %v521 = vadd.f32 %v472, %v520
      %v522 = vpop.f32.mrf.mxu0
      %v523 = vadd.f32 %v474, %v522
      %524 = vmatmul.bf16.gmra.mxu0 %v237
      %v525 = vpop.f32.mrf.mxu0
      %v526 = vadd.f32 %v477, %v525
      %v527 = vpop.f32.mrf.mxu0
      %v528 = vadd.f32 %v479, %v527
      %529 = vdwg.mxu0
      %530 = vmatpush.bf16.msra.mxu0 %v414
      %531 = vmatpush.bf16.msra.mxu0 %v412
      %532 = vmatpush.bf16.msra.mxu0 %v410
      %533 = vmatpush.bf16.msra.mxu0 %v408
      %534 = vmatpush.bf16.msra.mxu0 %v406
      %535 = vmatpush.bf16.msra.mxu0 %v404
      %536 = vmatpush.bf16.msra.mxu0 %v402
      %537 = vmatpush.bf16.msra.mxu0 %v400
      %538 = vmatmul.bf16.gmra.mxu0 %v210
      %v539 = vpop.f32.mrf.mxu0
      %v540 = vadd.f32 %v491, %v539
      %v541 = vpop.f32.mrf.mxu0
      %v542 = vadd.f32 %v493, %v541
      %543 = vmatmul.bf16.gmra.mxu0 %v214
      %v544 = vpop.f32.mrf.mxu0
      %v545 = vadd.f32 %v496, %v544
      %v546 = vpop.f32.mrf.mxu0
      %v547 = vadd.f32 %v498, %v546
      %548 = vmatmul.bf16.gmra.mxu0 %v218
      %v549 = vpop.f32.mrf.mxu0
      %v550 = vadd.f32 %v501, %v549
      %v551 = vpop.f32.mrf.mxu0
      %v552 = vadd.f32 %v503, %v551
      %553 = vmatmul.bf16.gmra.mxu0 %v222
      %v554 = vpop.f32.mrf.mxu0
      %v555 = vadd.f32 %v506, %v554
      %v556 = vpop.f32.mrf.mxu0
      %v557 = vadd.f32 %v508, %v556
      %558 = vmatmul.bf16.gmra.mxu0 %v226
      %v559 = vpop.f32.mrf.mxu0
      %v560 = vadd.f32 %v511, %v559
      %v561 = vpop.f32.mrf.mxu0
      %v562 = vadd.f32 %v513, %v561
      %563 = vmatmul.bf16.gmra.mxu0 %v230
      %v564 = vpop.f32.mrf.mxu0
      %v565 = vadd.f32 %v516, %v564
      %v566 = vpop.f32.mrf.mxu0
      %v567 = vadd.f32 %v518, %v566
      %568 = vmatmul.bf16.gmra.mxu0 %v234
      %v569 = vpop.f32.mrf.mxu0
      %v570 = vadd.f32 %v521, %v569
      %v571 = vpop.f32.mrf.mxu0
      %v572 = vadd.f32 %v523, %v571
      %573 = vmatmul.bf16.gmra.mxu0 %v238
      %v574 = vpop.f32.mrf.mxu0
      %v575 = vadd.f32 %v526, %v574
      %v576 = vpop.f32.mrf.mxu0
      %v577 = vadd.f32 %v528, %v576
      %578 = vdwg.mxu0
      %579 = vmatpush.bf16.msra.mxu0 %v430
      %580 = vmatpush.bf16.msra.mxu0 %v428
      %581 = vmatpush.bf16.msra.mxu0 %v426
      %582 = vmatpush.bf16.msra.mxu0 %v424
      %583 = vmatpush.bf16.msra.mxu0 %v422
      %584 = vmatpush.bf16.msra.mxu0 %v420
      %585 = vmatpush.bf16.msra.mxu0 %v418
      %586 = vmatpush.bf16.msra.mxu0 %v416
      %587 = vmatmul.bf16.gmra.mxu0 %v211
      %v588 = vpop.f32.mrf.mxu0
      %v589 = vadd.f32 %v540, %v588
      %v590 = vpop.f32.mrf.mxu0
      %v591 = vadd.f32 %v542, %v590
      %592 = vmatmul.bf16.gmra.mxu0 %v215
      %v593 = vpop.f32.mrf.mxu0
      %v594 = vadd.f32 %v545, %v593
      %v595 = vpop.f32.mrf.mxu0
      %v596 = vadd.f32 %v547, %v595
      %597 = vmatmul.bf16.gmra.mxu0 %v219
      %v598 = vpop.f32.mrf.mxu0
      %v599 = vadd.f32 %v550, %v598
      %v600 = vpop.f32.mrf.mxu0
      %v601 = vadd.f32 %v552, %v600
      %602 = vmatmul.bf16.gmra.mxu0 %v223
      %v603 = vpop.f32.mrf.mxu0
      %v604 = vadd.f32 %v555, %v603
      %v605 = vpop.f32.mrf.mxu0
      %v606 = vadd.f32 %v557, %v605
      %607 = vmatmul.bf16.gmra.mxu0 %v227
      %v608 = vpop.f32.mrf.mxu0
      %v609 = vadd.f32 %v560, %v608
      %v610 = vpop.f32.mrf.mxu0
      %v611 = vadd.f32 %v562, %v610
      %612 = vmatmul.bf16.gmra.mxu0 %v231
      %v613 = vpop.f32.mrf.mxu0
      %v614 = vadd.f32 %v565, %v613
      %v615 = vpop.f32.mrf.mxu0
      %v616 = vadd.f32 %v567, %v615
      %617 = vmatmul.bf16.gmra.mxu0 %v235
      %v618 = vpop.f32.mrf.mxu0
      %v619 = vadd.f32 %v570, %v618
      %v620 = vpop.f32.mrf.mxu0
      %v621 = vadd.f32 %v572, %v620
      %622 = vmatmul.bf16.gmra.mxu0 %v239
      %v623 = vpop.f32.mrf.mxu0
      %v624 = vadd.f32 %v575, %v623
      %v625 = vpop.f32.mrf.mxu0
      %v626 = vadd.f32 %v577, %v625
      %627 = vdwg.mxu0
      %628 = vmatpush.bf16.msra.mxu0 %v383
      %629 = vmatpush.bf16.msra.mxu0 %v381
      %630 = vmatpush.bf16.msra.mxu0 %v379
      %631 = vmatpush.bf16.msra.mxu0 %v377
      %632 = vmatpush.bf16.msra.mxu0 %v375
      %633 = vmatpush.bf16.msra.mxu0 %v373
      %634 = vmatpush.bf16.msra.mxu0 %v371
      %635 = vmatpush.bf16.msra.mxu0 %v369
      %636 = vmatmul.bf16.gmra.mxu0 %v208
      %v637 = vpop.f32.mrf.mxu0
      %v638 = vadd.f32 0.0, %v637
      %v639 = vpop.f32.mrf.mxu0
      %v640 = vadd.f32 0.0, %v639
      %641 = vmatmul.bf16.gmra.mxu0 %v212
      %v642 = vpop.f32.mrf.mxu0
      %v643 = vadd.f32 0.0, %v642
      %v644 = vpop.f32.mrf.mxu0
      %v645 = vadd.f32 0.0, %v644
      %646 = vmatmul.bf16.gmra.mxu0 %v216
      %v647 = vpop.f32.mrf.mxu0
      %v648 = vadd.f32 0.0, %v647
      %v649 = vpop.f32.mrf.mxu0
      %v650 = vadd.f32 0.0, %v649
      %651 = vmatmul.bf16.gmra.mxu0 %v220
      %v652 = vpop.f32.mrf.mxu0
      %v653 = vadd.f32 0.0, %v652
      %v654 = vpop.f32.mrf.mxu0
      %v655 = vadd.f32 0.0, %v654
      %656 = vmatmul.bf16.gmra.mxu0 %v224
      %v657 = vpop.f32.mrf.mxu0
      %v658 = vadd.f32 0.0, %v657
      %v659 = vpop.f32.mrf.mxu0
      %v660 = vadd.f32 0.0, %v659
      %661 = vmatmul.bf16.gmra.mxu0 %v228
      %v662 = vpop.f32.mrf.mxu0
      %v663 = vadd.f32 0.0, %v662
      %v664 = vpop.f32.mrf.mxu0
      %v665 = vadd.f32 0.0, %v664
      %666 = vmatmul.bf16.gmra.mxu0 %v232
      %v667 = vpop.f32.mrf.mxu0
      %v668 = vadd.f32 0.0, %v667
      %v669 = vpop.f32.mrf.mxu0
      %v670 = vadd.f32 0.0, %v669
      %671 = vmatmul.bf16.gmra.mxu0 %v236
      %v672 = vpop.f32.mrf.mxu0
      %v673 = vadd.f32 0.0, %v672
      %v674 = vpop.f32.mrf.mxu0
      %v675 = vadd.f32 0.0, %v674
      %676 = vdwg.mxu0
      %677 = vmatpush.bf16.msra.mxu0 %v399
      %678 = vmatpush.bf16.msra.mxu0 %v397
      %679 = vmatpush.bf16.msra.mxu0 %v395
      %680 = vmatpush.bf16.msra.mxu0 %v393
      %681 = vmatpush.bf16.msra.mxu0 %v391
      %682 = vmatpush.bf16.msra.mxu0 %v389
      %683 = vmatpush.bf16.msra.mxu0 %v387
      %684 = vmatpush.bf16.msra.mxu0 %v385
      %685 = vmatmul.bf16.gmra.mxu0 %v209
      %v686 = vpop.f32.mrf.mxu0
      %v687 = vadd.f32 %v638, %v686
      %v688 = vpop.f32.mrf.mxu0
      %v689 = vadd.f32 %v640, %v688
      %690 = vmatmul.bf16.gmra.mxu0 %v213
      %v691 = vpop.f32.mrf.mxu0
      %v692 = vadd.f32 %v643, %v691
      %v693 = vpop.f32.mrf.mxu0
      %v694 = vadd.f32 %v645, %v693
      %695 = vmatmul.bf16.gmra.mxu0 %v217
      %v696 = vpop.f32.mrf.mxu0
      %v697 = vadd.f32 %v648, %v696
      %v698 = vpop.f32.mrf.mxu0
      %v699 = vadd.f32 %v650, %v698
      %700 = vmatmul.bf16.gmra.mxu0 %v221
      %v701 = vpop.f32.mrf.mxu0
      %v702 = vadd.f32 %v653, %v701
      %v703 = vpop.f32.mrf.mxu0
      %v704 = vadd.f32 %v655, %v703
      %705 = vmatmul.bf16.gmra.mxu0 %v225
      %v706 = vpop.f32.mrf.mxu0
      %v707 = vadd.f32 %v658, %v706
      %v708 = vpop.f32.mrf.mxu0
      %v709 = vadd.f32 %v660, %v708
      %710 = vmatmul.bf16.gmra.mxu0 %v229
      %v711 = vpop.f32.mrf.mxu0
      %v712 = vadd.f32 %v663, %v711
      %v713 = vpop.f32.mrf.mxu0
      %v714 = vadd.f32 %v665, %v713
      %715 = vmatmul.bf16.gmra.mxu0 %v233
      %v716 = vpop.f32.mrf.mxu0
      %v717 = vadd.f32 %v668, %v716
      %v718 = vpop.f32.mrf.mxu0
      %v719 = vadd.f32 %v670, %v718
      %720 = vmatmul.bf16.gmra.mxu0 %v237
      %v721 = vpop.f32.mrf.mxu0
      %v722 = vadd.f32 %v673, %v721
      %v723 = vpop.f32.mrf.mxu0
      %v724 = vadd.f32 %v675, %v723
      %725 = vdwg.mxu0
      %726 = vmatpush.bf16.msra.mxu0 %v415
      %727 = vmatpush.bf16.msra.mxu0 %v413
      %728 = vmatpush.bf16.msra.mxu0 %v411
      %729 = vmatpush.bf16.msra.mxu0 %v409
      %730 = vmatpush.bf16.msra.mxu0 %v407
      %731 = vmatpush.bf16.msra.mxu0 %v405
      %732 = vmatpush.bf16.msra.mxu0 %v403
      %733 = vmatpush.bf16.msra.mxu0 %v401
      %734 = vmatmul.bf16.gmra.mxu0 %v210
      %v735 = vpop.f32.mrf.mxu0
      %v736 = vadd.f32 %v687, %v735
      %v737 = vpop.f32.mrf.mxu0
      %v738 = vadd.f32 %v689, %v737
      %739 = vmatmul.bf16.gmra.mxu0 %v214
      %v740 = vpop.f32.mrf.mxu0
      %v741 = vadd.f32 %v692, %v740
      %v742 = vpop.f32.mrf.mxu0
      %v743 = vadd.f32 %v694, %v742
      %744 = vmatmul.bf16.gmra.mxu0 %v218
      %v745 = vpop.f32.mrf.mxu0
      %v746 = vadd.f32 %v697, %v745
      %v747 = vpop.f32.mrf.mxu0
      %v748 = vadd.f32 %v699, %v747
      %749 = vmatmul.bf16.gmra.mxu0 %v222
      %v750 = vpop.f32.mrf.mxu0
      %v751 = vadd.f32 %v702, %v750
      %v752 = vpop.f32.mrf.mxu0
      %v753 = vadd.f32 %v704, %v752
      %754 = vmatmul.bf16.gmra.mxu0 %v226
      %v755 = vpop.f32.mrf.mxu0
      %v756 = vadd.f32 %v707, %v755
      %v757 = vpop.f32.mrf.mxu0
      %v758 = vadd.f32 %v709, %v757
      %759 = vmatmul.bf16.gmra.mxu0 %v230
      %v760 = vpop.f32.mrf.mxu0
      %v761 = vadd.f32 %v712, %v760
      %v762 = vpop.f32.mrf.mxu0
      %v763 = vadd.f32 %v714, %v762
      %764 = vmatmul.bf16.gmra.mxu0 %v234
      %v765 = vpop.f32.mrf.mxu0
      %v766 = vadd.f32 %v717, %v765
      %v767 = vpop.f32.mrf.mxu0
      %v768 = vadd.f32 %v719, %v767
      %769 = vmatmul.bf16.gmra.mxu0 %v238
      %v770 = vpop.f32.mrf.mxu0
      %v771 = vadd.f32 %v722, %v770
      %v772 = vpop.f32.mrf.mxu0
      %v773 = vadd.f32 %v724, %v772
      %774 = vdwg.mxu0
      %775 = vmatpush.bf16.msra.mxu0 %v431
      %776 = vmatpush.bf16.msra.mxu0 %v429
      %777 = vmatpush.bf16.msra.mxu0 %v427
      %778 = vmatpush.bf16.msra.mxu0 %v425
      %779 = vmatpush.bf16.msra.mxu0 %v423
      %780 = vmatpush.bf16.msra.mxu0 %v421
      %781 = vmatpush.bf16.msra.mxu0 %v419
      %782 = vmatpush.bf16.msra.mxu0 %v417
      %783 = vmatmul.bf16.gmra.mxu0 %v211
      %v784 = vpop.f32.mrf.mxu0
      %v785 = vadd.f32 %v736, %v784
      %v786 = vpop.f32.mrf.mxu0
      %v787 = vadd.f32 %v738, %v786
      %788 = vmatmul.bf16.gmra.mxu0 %v215
      %v789 = vpop.f32.mrf.mxu0
      %v790 = vadd.f32 %v741, %v789
      %v791 = vpop.f32.mrf.mxu0
      %v792 = vadd.f32 %v743, %v791
      %793 = vmatmul.bf16.gmra.mxu0 %v219
      %v794 = vpop.f32.mrf.mxu0
      %v795 = vadd.f32 %v746, %v794
      %v796 = vpop.f32.mrf.mxu0
      %v797 = vadd.f32 %v748, %v796
      %798 = vmatmul.bf16.gmra.mxu0 %v223
      %v799 = vpop.f32.mrf.mxu0
      %v800 = vadd.f32 %v751, %v799
      %v801 = vpop.f32.mrf.mxu0
      %v802 = vadd.f32 %v753, %v801
      %803 = vmatmul.bf16.gmra.mxu0 %v227
      %v804 = vpop.f32.mrf.mxu0
      %v805 = vadd.f32 %v756, %v804
      %v806 = vpop.f32.mrf.mxu0
      %v807 = vadd.f32 %v758, %v806
      %808 = vmatmul.bf16.gmra.mxu0 %v231
      %v809 = vpop.f32.mrf.mxu0
      %v810 = vadd.f32 %v761, %v809
      %v811 = vpop.f32.mrf.mxu0
      %v812 = vadd.f32 %v763, %v811
      %813 = vmatmul.bf16.gmra.mxu0 %v235
      %v814 = vpop.f32.mrf.mxu0
      %v815 = vadd.f32 %v766, %v814
      %v816 = vpop.f32.mrf.mxu0
      %v817 = vadd.f32 %v768, %v816
      %818 = vmatmul.bf16.gmra.mxu0 %v239
      %v819 = vpop.f32.mrf.mxu0
      %v820 = vadd.f32 %v771, %v819
      %v821 = vpop.f32.mrf.mxu0
      %v822 = vadd.f32 %v773, %v821
      %823 = vdwg.mxu0
      %v824 = vpack.c.bf16 %v591, %v589
      %v825 = vpack.c.bf16 %v596, %v594
      %v826 = vpack.c.bf16 %v601, %v599
      %v827 = vpack.c.bf16 %v606, %v604
      %v828 = vpack.c.bf16 %v611, %v609
      %v829 = vpack.c.bf16 %v616, %v614
      %v830 = vpack.c.bf16 %v621, %v619
      %v831 = vpack.c.bf16 %v626, %v624
      %840 = vrot.lane.b32.xlu0 %v824, 64
      %v841 = vpop.permute.xlu0 %840
      %842 = vrot.lane.b32.xlu0 %v825, 64
      %v843 = vpop.permute.xlu0 %842
      %844 = vrot.lane.b32.xlu0 %v826, 64
      %v845 = vpop.permute.xlu0 %844
      %846 = vrot.lane.b32.xlu0 %v827, 64
      %v847 = vpop.permute.xlu0 %846
      %848 = vrot.lane.b32.xlu0 %v828, 64
      %v849 = vpop.permute.xlu0 %848
      %850 = vrot.lane.b32.xlu0 %v829, 64
      %v851 = vpop.permute.xlu0 %850
      %852 = vrot.lane.b32.xlu0 %v830, 64
      %v853 = vpop.permute.xlu0 %852
      %854 = vrot.lane.b32.xlu0 %v831, 64
      %v855 = vpop.permute.xlu0 %854
      %vm856 = vcmask 523264
      %v858 = vsel %vm856, %v824, 0
      %v861 = vsel %vm856, %v825, 0
      %v864 = vsel %vm856, %v826, 0
      %v867 = vsel %vm856, %v827, 0
      %v870 = vsel %vm856, %v828, 0
      %v873 = vsel %vm856, %v829, 0
      %v876 = vsel %vm856, %v830, 0
      %v879 = vsel %vm856, %v831, 0
      %v882 = vsel %vm856, %v841, 0
      %v885 = vsel %vm856, %v843, 0
      %v888 = vsel %vm856, %v845, 0
      %v891 = vsel %vm856, %v847, 0
      %v894 = vsel %vm856, %v849, 0
      %v897 = vsel %vm856, %v851, 0
      %v900 = vsel %vm856, %v853, 0
      %v903 = vsel %vm856, %v855, 0
      %905 = vmatpush.bf16.xpose.msra.mxu0 %v903
      %906 = vmatpush.bf16.xpose.msra.mxu0 %v900
      %907 = vmatpush.bf16.xpose.msra.mxu0 %v897
      %908 = vmatpush.bf16.xpose.msra.mxu0 %v894
      %909 = vmatpush.bf16.xpose.msra.mxu0 %v891
      %910 = vmatpush.bf16.xpose.msra.mxu0 %v888
      %911 = vmatpush.bf16.xpose.msra.mxu0 %v885
      %912 = vmatpush.bf16.xpose.msra.mxu0 %v882
      %913 = vmatmul.bf16.gmra.mxu0 %v858
      %v914 = vpop.f32.mrf.mxu0
      %v915 = vadd.f32 0.0, %v914
      %v916 = vpop.f32.mrf.mxu0
      %v917 = vadd.f32 0.0, %v916
      %918 = vmatmul.bf16.gmra.mxu0 %v861
      %v919 = vpop.f32.mrf.mxu0
      %v920 = vadd.f32 0.0, %v919
      %v921 = vpop.f32.mrf.mxu0
      %v922 = vadd.f32 0.0, %v921
      %923 = vmatmul.bf16.gmra.mxu0 %v864
      %v924 = vpop.f32.mrf.mxu0
      %v925 = vadd.f32 0.0, %v924
      %v926 = vpop.f32.mrf.mxu0
      %v927 = vadd.f32 0.0, %v926
      %928 = vmatmul.bf16.gmra.mxu0 %v867
      %v929 = vpop.f32.mrf.mxu0
      %v930 = vadd.f32 0.0, %v929
      %v931 = vpop.f32.mrf.mxu0
      %v932 = vadd.f32 0.0, %v931
      %933 = vmatmul.bf16.gmra.mxu0 %v870
      %v934 = vpop.f32.mrf.mxu0
      %v935 = vadd.f32 0.0, %v934
      %v936 = vpop.f32.mrf.mxu0
      %v937 = vadd.f32 0.0, %v936
      %938 = vmatmul.bf16.gmra.mxu0 %v873
      %v939 = vpop.f32.mrf.mxu0
      %v940 = vadd.f32 0.0, %v939
      %v941 = vpop.f32.mrf.mxu0
      %v942 = vadd.f32 0.0, %v941
      %943 = vmatmul.bf16.gmra.mxu0 %v876
      %v944 = vpop.f32.mrf.mxu0
      %v945 = vadd.f32 0.0, %v944
      %v946 = vpop.f32.mrf.mxu0
      %v947 = vadd.f32 0.0, %v946
      %948 = vmatmul.bf16.gmra.mxu0 %v879
      %v949 = vpop.f32.mrf.mxu0
      %v950 = vadd.f32 0.0, %v949
      %v951 = vpop.f32.mrf.mxu0
      %v952 = vadd.f32 0.0, %v951
      %953 = vdwg.mxu0
      %v954 = vmul.f32 %v915, 0.125
      %v955 = vmul.f32 %v917, 0.125
      %v956 = vmul.f32 %v920, 0.125
      %v957 = vmul.f32 %v922, 0.125
      %v958 = vmul.f32 %v925, 0.125
      %v959 = vmul.f32 %v927, 0.125
      %v960 = vmul.f32 %v930, 0.125
      %v961 = vmul.f32 %v932, 0.125
      %v962 = vmul.f32 %v935, 0.125
      %v963 = vmul.f32 %v937, 0.125
      %v964 = vmul.f32 %v940, 0.125
      %v965 = vmul.f32 %v942, 0.125
      %v966 = vmul.f32 %v945, 0.125
      %v967 = vmul.f32 %v947, 0.125
      %v968 = vmul.f32 %v950, 0.125
      %v969 = vmul.f32 %v952, 0.125
      %v970 = vlaneseq
      %v971 = vshrl.u32 %v970, 7
      %v972 = vadd.s32 %v971, 8
      %v973 = vadd.s32 %v971, 16
      %v974 = vadd.s32 %v971, 24
      %v975 = vadd.s32 %v971, 32
      %v976 = vadd.s32 %v971, 40
      %v977 = vadd.s32 %v971, 48
      %v978 = vadd.s32 %v971, 56
      %v979 = vadd.s32 %v971, 64
      %v980 = vadd.s32 %v971, 72
      %v981 = vadd.s32 %v971, 80
      %v982 = vadd.s32 %v971, 88
      %v983 = vadd.s32 %v971, 96
      %v984 = vadd.s32 %v971, 104
      %v985 = vadd.s32 %v971, 112
      %v986 = vadd.s32 %v971, 120
      %v987 = vlaneseq
      %v988 = vand.u32 %v987, 127
      %vm989 = vcmp.le.s32.totalorder %v988, %v971
      %vm990 = vcmp.le.s32.totalorder %v988, %v972
      %vm991 = vcmp.le.s32.totalorder %v988, %v973
      %vm992 = vcmp.le.s32.totalorder %v988, %v974
      %vm993 = vcmp.le.s32.totalorder %v988, %v975
      %vm994 = vcmp.le.s32.totalorder %v988, %v976
      %vm995 = vcmp.le.s32.totalorder %v988, %v977
      %vm996 = vcmp.le.s32.totalorder %v988, %v978
      %vm997 = vcmp.le.s32.totalorder %v988, %v979
      %vm998 = vcmp.le.s32.totalorder %v988, %v980
      %vm999 = vcmp.le.s32.totalorder %v988, %v981
      %vm1000 = vcmp.le.s32.totalorder %v988, %v982
      %vm1001 = vcmp.le.s32.totalorder %v988, %v983
      %vm1002 = vcmp.le.s32.totalorder %v988, %v984
      %vm1003 = vcmp.le.s32.totalorder %v988, %v985
      %vm1004 = vcmp.le.s32.totalorder %v988, %v986
      %v1005 = vsel %vm989, %v954, -inf
      %v1006 = vsel %vm990, %v955, -inf
      %v1007 = vsel %vm991, %v956, -inf
      %v1008 = vsel %vm992, %v957, -inf
      %v1009 = vsel %vm993, %v958, -inf
      %v1010 = vsel %vm994, %v959, -inf
      %v1011 = vsel %vm995, %v960, -inf
      %v1012 = vsel %vm996, %v961, -inf
      %v1013 = vsel %vm997, %v962, -inf
      %v1014 = vsel %vm998, %v963, -inf
      %v1015 = vsel %vm999, %v964, -inf
      %v1016 = vsel %vm1000, %v965, -inf
      %v1017 = vsel %vm1001, %v966, -inf
      %v1018 = vsel %vm1002, %v967, -inf
      %v1019 = vsel %vm1003, %v968, -inf
      %v1020 = vsel %vm1004, %v969, -inf
      %1021 = vmax.xlane.f32.xlu0 %v1005
      %v1022 = vpop.xlane.xlu0 %1021
      %1023 = vmax.xlane.f32.xlu0 %v1006
      %v1024 = vpop.xlane.xlu0 %1023
      %1025 = vmax.xlane.f32.xlu0 %v1007
      %v1026 = vpop.xlane.xlu0 %1025
      %1027 = vmax.xlane.f32.xlu0 %v1008
      %v1028 = vpop.xlane.xlu0 %1027
      %1029 = vmax.xlane.f32.xlu0 %v1009
      %v1030 = vpop.xlane.xlu0 %1029
      %1031 = vmax.xlane.f32.xlu0 %v1010
      %v1032 = vpop.xlane.xlu0 %1031
      %1033 = vmax.xlane.f32.xlu0 %v1011
      %v1034 = vpop.xlane.xlu0 %1033
      %1035 = vmax.xlane.f32.xlu0 %v1012
      %v1036 = vpop.xlane.xlu0 %1035
      %1037 = vmax.xlane.f32.xlu0 %v1013
      %v1038 = vpop.xlane.xlu0 %1037
      %1039 = vmax.xlane.f32.xlu0 %v1014
      %v1040 = vpop.xlane.xlu0 %1039
      %1041 = vmax.xlane.f32.xlu0 %v1015
      %v1042 = vpop.xlane.xlu0 %1041
      %1043 = vmax.xlane.f32.xlu0 %v1016
      %v1044 = vpop.xlane.xlu0 %1043
      %1045 = vmax.xlane.f32.xlu0 %v1017
      %v1046 = vpop.xlane.xlu0 %1045
      %1047 = vmax.xlane.f32.xlu0 %v1018
      %v1048 = vpop.xlane.xlu0 %1047
      %1049 = vmax.xlane.f32.xlu0 %v1019
      %v1050 = vpop.xlane.xlu0 %1049
      %1051 = vmax.xlane.f32.xlu0 %v1020
      %v1052 = vpop.xlane.xlu0 %1051
      %v1053 = vsub.f32 %v1005, %v1022
      %v1054 = vsub.f32 %v1006, %v1024
      %v1055 = vsub.f32 %v1007, %v1026
      %v1056 = vsub.f32 %v1008, %v1028
      %v1057 = vsub.f32 %v1009, %v1030
      %v1058 = vsub.f32 %v1010, %v1032
      %v1059 = vsub.f32 %v1011, %v1034
      %v1060 = vsub.f32 %v1012, %v1036
      %v1061 = vsub.f32 %v1013, %v1038
      %v1062 = vsub.f32 %v1014, %v1040
      %v1063 = vsub.f32 %v1015, %v1042
      %v1064 = vsub.f32 %v1016, %v1044
      %v1065 = vsub.f32 %v1017, %v1046
      %v1066 = vsub.f32 %v1018, %v1048
      %v1067 = vsub.f32 %v1019, %v1050
      %v1068 = vsub.f32 %v1020, %v1052
      %v1069 = vmul.f32 %v1053, 1.442695
      %v1070 = vpow.pop %v1069
      %v1071 = vmul.f32 %v1054, 1.442695
      %v1072 = vpow.pop %v1071
      %v1073 = vmul.f32 %v1055, 1.442695
      %v1074 = vpow.pop %v1073
      %v1075 = vmul.f32 %v1056, 1.442695
      %v1076 = vpow.pop %v1075
      %v1077 = vmul.f32 %v1057, 1.442695
      %v1078 = vpow.pop %v1077
      %v1079 = vmul.f32 %v1058, 1.442695
      %v1080 = vpow.pop %v1079
      %v1081 = vmul.f32 %v1059, 1.442695
      %v1082 = vpow.pop %v1081
      %v1083 = vmul.f32 %v1060, 1.442695
      %v1084 = vpow.pop %v1083
      %v1085 = vmul.f32 %v1061, 1.442695
      %v1086 = vpow.pop %v1085
      %v1087 = vmul.f32 %v1062, 1.442695
      %v1088 = vpow.pop %v1087
      %v1089 = vmul.f32 %v1063, 1.442695
      %v1090 = vpow.pop %v1089
      %v1091 = vmul.f32 %v1064, 1.442695
      %v1092 = vpow.pop %v1091
      %v1093 = vmul.f32 %v1065, 1.442695
      %v1094 = vpow.pop %v1093
      %v1095 = vmul.f32 %v1066, 1.442695
      %v1096 = vpow.pop %v1095
      %v1097 = vmul.f32 %v1067, 1.442695
      %v1098 = vpow.pop %v1097
      %v1099 = vmul.f32 %v1068, 1.442695
      %v1100 = vpow.pop %v1099
      %1101 = vadd.xlane.f32.xlu0 %v1070
      %v1102 = vpop.xlane.xlu0 %1101
      %1103 = vadd.xlane.f32.xlu0 %v1072
      %v1104 = vpop.xlane.xlu0 %1103
      %1105 = vadd.xlane.f32.xlu0 %v1074
      %v1106 = vpop.xlane.xlu0 %1105
      %1107 = vadd.xlane.f32.xlu0 %v1076
      %v1108 = vpop.xlane.xlu0 %1107
      %1109 = vadd.xlane.f32.xlu0 %v1078
      %v1110 = vpop.xlane.xlu0 %1109
      %1111 = vadd.xlane.f32.xlu0 %v1080
      %v1112 = vpop.xlane.xlu0 %1111
      %1113 = vadd.xlane.f32.xlu0 %v1082
      %v1114 = vpop.xlane.xlu0 %1113
      %1115 = vadd.xlane.f32.xlu0 %v1084
      %v1116 = vpop.xlane.xlu0 %1115
      %1117 = vadd.xlane.f32.xlu0 %v1086
      %v1118 = vpop.xlane.xlu0 %1117
      %1119 = vadd.xlane.f32.xlu0 %v1088
      %v1120 = vpop.xlane.xlu0 %1119
      %1121 = vadd.xlane.f32.xlu0 %v1090
      %v1122 = vpop.xlane.xlu0 %1121
      %1123 = vadd.xlane.f32.xlu0 %v1092
      %v1124 = vpop.xlane.xlu0 %1123
      %1125 = vadd.xlane.f32.xlu0 %v1094
      %v1126 = vpop.xlane.xlu0 %1125
      %1127 = vadd.xlane.f32.xlu0 %v1096
      %v1128 = vpop.xlane.xlu0 %1127
      %1129 = vadd.xlane.f32.xlu0 %v1098
      %v1130 = vpop.xlane.xlu0 %1129
      %1131 = vadd.xlane.f32.xlu0 %v1100
      %v1132 = vpop.xlane.xlu0 %1131
      %v1133 = vrcp.pop %v1102
      %v1134 = vrcp.pop %v1104
      %v1135 = vrcp.pop %v1106
      %v1136 = vrcp.pop %v1108
      %v1137 = vrcp.pop %v1110
      %v1138 = vrcp.pop %v1112
      %v1139 = vrcp.pop %v1114
      %v1140 = vrcp.pop %v1116
      %v1141 = vrcp.pop %v1118
      %v1142 = vrcp.pop %v1120
      %v1143 = vrcp.pop %v1122
      %v1144 = vrcp.pop %v1124
      %v1145 = vrcp.pop %v1126
      %v1146 = vrcp.pop %v1128
      %v1147 = vrcp.pop %v1130
      %v1148 = vrcp.pop %v1132
      %v1149 = vmul.f32 %v1070, %v1133
      %v1150 = vmul.f32 %v1072, %v1134
      %v1151 = vmul.f32 %v1074, %v1135
      %v1152 = vmul.f32 %v1076, %v1136
      %v1153 = vmul.f32 %v1078, %v1137
      %v1154 = vmul.f32 %v1080, %v1138
      %v1155 = vmul.f32 %v1082, %v1139
      %v1156 = vmul.f32 %v1084, %v1140
      %v1157 = vmul.f32 %v1086, %v1141
      %v1158 = vmul.f32 %v1088, %v1142
      %v1159 = vmul.f32 %v1090, %v1143
      %v1160 = vmul.f32 %v1092, %v1144
      %v1161 = vmul.f32 %v1094, %v1145
      %v1162 = vmul.f32 %v1096, %v1146
      %v1163 = vmul.f32 %v1098, %v1147
      %v1164 = vmul.f32 %v1100, %v1148
      %v1165 = vpack.c.bf16 %v1150, %v1149
      %v1166 = vpack.c.bf16 %v1152, %v1151
      %v1167 = vpack.c.bf16 %v1154, %v1153
      %v1168 = vpack.c.bf16 %v1156, %v1155
      %v1169 = vpack.c.bf16 %v1158, %v1157
      %v1170 = vpack.c.bf16 %v1160, %v1159
      %v1171 = vpack.c.bf16 %v1162, %v1161
      %v1172 = vpack.c.bf16 %v1164, %v1163
      %v1173 = vpack.c.bf16 %v787, %v785
      %v1174 = vpack.c.bf16 %v792, %v790
      %v1175 = vpack.c.bf16 %v797, %v795
      %v1176 = vpack.c.bf16 %v802, %v800
      %v1177 = vpack.c.bf16 %v807, %v805
      %v1178 = vpack.c.bf16 %v812, %v810
      %v1179 = vpack.c.bf16 %v817, %v815
      %v1180 = vpack.c.bf16 %v822, %v820
      %1181 = vmatpush.bf16.msra.mxu0 %v1180
      %1182 = vmatpush.bf16.msra.mxu0 %v1179
      %1183 = vmatpush.bf16.msra.mxu0 %v1178
      %1184 = vmatpush.bf16.msra.mxu0 %v1177
      %1185 = vmatpush.bf16.msra.mxu0 %v1176
      %1186 = vmatpush.bf16.msra.mxu0 %v1175
      %1187 = vmatpush.bf16.msra.mxu0 %v1174
      %1188 = vmatpush.bf16.msra.mxu0 %v1173
      %1189 = vmatmul.bf16.gmra.mxu0 %v1165
      %v1190 = vpop.f32.mrf.mxu0
      %v1191 = vadd.f32 0.0, %v1190
      %v1192 = vpop.f32.mrf.mxu0
      %v1193 = vadd.f32 0.0, %v1192
      %1194 = vmatmul.bf16.gmra.mxu0 %v1166
      %v1195 = vpop.f32.mrf.mxu0
      %v1196 = vadd.f32 0.0, %v1195
      %v1197 = vpop.f32.mrf.mxu0
      %v1198 = vadd.f32 0.0, %v1197
      %1199 = vmatmul.bf16.gmra.mxu0 %v1167
      %v1200 = vpop.f32.mrf.mxu0
      %v1201 = vadd.f32 0.0, %v1200
      %v1202 = vpop.f32.mrf.mxu0
      %v1203 = vadd.f32 0.0, %v1202
      %1204 = vmatmul.bf16.gmra.mxu0 %v1168
      %v1205 = vpop.f32.mrf.mxu0
      %v1206 = vadd.f32 0.0, %v1205
      %v1207 = vpop.f32.mrf.mxu0
      %v1208 = vadd.f32 0.0, %v1207
      %1209 = vmatmul.bf16.gmra.mxu0 %v1169
      %v1210 = vpop.f32.mrf.mxu0
      %v1211 = vadd.f32 0.0, %v1210
      %v1212 = vpop.f32.mrf.mxu0
      %v1213 = vadd.f32 0.0, %v1212
      %1214 = vmatmul.bf16.gmra.mxu0 %v1170
      %v1215 = vpop.f32.mrf.mxu0
      %v1216 = vadd.f32 0.0, %v1215
      %v1217 = vpop.f32.mrf.mxu0
      %v1218 = vadd.f32 0.0, %v1217
      %1219 = vmatmul.bf16.gmra.mxu0 %v1171
      %v1220 = vpop.f32.mrf.mxu0
      %v1221 = vadd.f32 0.0, %v1220
      %v1222 = vpop.f32.mrf.mxu0
      %v1223 = vadd.f32 0.0, %v1222
      %1224 = vmatmul.bf16.gmra.mxu0 %v1172
      %v1225 = vpop.f32.mrf.mxu0
      %v1226 = vadd.f32 0.0, %v1225
      %v1227 = vpop.f32.mrf.mxu0
      %v1228 = vadd.f32 0.0, %v1227
      %1229 = vdwg.mxu0
      %1230 = vst.msk [vmem:[%s143] sm:$0xff] %vm856, %v1191
      %1231 = vst.msk [vmem:[%s143 + $0x8] sm:$0xff] %vm856, %v1193
      %1232 = vst.msk [vmem:[%s143 + $0x10] sm:$0xff] %vm856, %v1196
      %1233 = vst.msk [vmem:[%s143 + $0x18] sm:$0xff] %vm856, %v1198
      %1234 = vst.msk [vmem:[%s143 + $0x20] sm:$0xff] %vm856, %v1201
      %1235 = vst.msk [vmem:[%s143 + $0x28] sm:$0xff] %vm856, %v1203
      %1236 = vst.msk [vmem:[%s143 + $0x30] sm:$0xff] %vm856, %v1206
      %1237 = vst.msk [vmem:[%s143 + $0x38] sm:$0xff] %vm856, %v1208
      %1238 = vst.msk [vmem:[%s143 + $0x40] sm:$0xff] %vm856, %v1211
      %1239 = vst.msk [vmem:[%s143 + $0x48] sm:$0xff] %vm856, %v1213
      %1240 = vst.msk [vmem:[%s143 + $0x50] sm:$0xff] %vm856, %v1216
      %1241 = vst.msk [vmem:[%s143 + $0x58] sm:$0xff] %vm856, %v1218
      %1242 = vst.msk [vmem:[%s143 + $0x60] sm:$0xff] %vm856, %v1221
      %1243 = vst.msk [vmem:[%s143 + $0x68] sm:$0xff] %vm856, %v1223
      %1244 = vst.msk [vmem:[%s143 + $0x70] sm:$0xff] %vm856, %v1226
      %1245 = vst.msk [vmem:[%s143 + $0x78] sm:$0xff] %vm856, %v1228
      %p1246 = scmp.lt.s32.totalorder %s13, 1
      %s1247 = scalar_select %p1246, %s13, 1
      %s1248 = smul.addr %s1247, 16
      %s1249 = smul.addr %s1248, 8
      %s1250 = scalar_lea.vmem %s2, %s1249
      // Predicated region
      $region29: #{tpu_custom_call.1} parent=27 // pred_check
        %p1251 = pneg %p78
      $region30: #{tpu_custom_call.1} parent=27 // pred_check_branch
        %1253 = sbr.rel (%p1251) target = $region32
      $region31: #{tpu_custom_call.1} parent=27 // pred_region
        _
      $region32: #{tpu_custom_call.1} parent=27 // pred_fallthru
        _
    $region28: #{tpu_custom_call.1} parent=5 // pred_fallthru
      _
    %p1254 = scmp.le.s32.totalorder 2, %s8
    // Predicated region
    $region33: #{tpu_custom_call.1} parent=5 // pred_check
      %p1255 = pneg %p1254
    $region34: #{tpu_custom_call.1} parent=5 // pred_check_branch
      %1257 = sbr.rel (%p1255) target = $region36
    $region35: #{tpu_custom_call.1} parent=5 // pred_region
      %s1258 = ssub.s32 %s8, 2
      // Predicated region
      $region37: #{tpu_custom_call.1} parent=35 // pred_check
        %p1259 = pneg %p84
      $region38: #{tpu_custom_call.1} parent=35 // pred_check_branch
        %1261 = sbr.rel (%p1259) target = $region40
      $region39: #{tpu_custom_call.1} parent=35 // pred_region
        %p1262 = scmp.lt.s32.totalorder %s14, 1
        %s1263 = scalar_select %p1262, %s14, 1
        %s1264 = smul.addr %s1263, 16
        %s1265 = smul.addr %s1264, 8
        %s1266 = scalar_lea.vmem %s2, %s1265
      $region40: #{tpu_custom_call.1} parent=35 // pred_fallthru
        _
    $region36: #{tpu_custom_call.1} parent=5 // pred_fallthru
      _
  $region6: #{tpu_custom_call.1} parent=0 // loop_footer
    %s12 = sadd.s32 1, %s8
  $region7: #{tpu_custom_call.1} parent=0 // loop_footer_branch
    %7 = sbr.rel target = $region3
  $region8: #{tpu_custom_call.1} parent=0 // loop_exit
    _

</llo_original>
